<compile_context>
chip_gen: v7x
topology: tpu7x:2x2x1
jax: 0.10.0
libtpu: 0.0.40
codegen_flags: <defaults>
</compile_context>

<pallas_src>
from functools import lru_cache

import numpy as np
import jax
import jax.numpy as jnp
from jax.experimental import pallas as pl
from jax.experimental.pallas import tpu as pltpu

BN_EPS = 1e-5           # nn.BatchNorm2d default eps
LEAKY_SLOPE = 0.01      # nn.LeakyReLU default negative_slope
POOL_KERNELS = (32, 16, 10, 5)
NUM_BRANCHES = len(POOL_KERNELS)

# MXU matmul operand dtype; accumulation stays f32 (preferred_element_type).
MXU_DTYPE = jnp.bfloat16


# --------------------------- static pool / upsample matrices ------------------------

def _pool_matrix_T(h, w, k):
    # nn.AvgPool2d((k,k)): stride=k, padding=0, floor mode.
    hp = (h - k) // k + 1
    wp = (w - k) // k + 1
    pt = np.zeros((h * w, hp * wp), np.float32)
    inv = 1.0 / (k * k)
    for i in range(hp):
        for j in range(wp):
            for r in range(i * k, i * k + k):
                for c in range(j * k, j * k + k):
                    pt[r * w + c, i * wp + j] = inv
    return pt, hp, wp


def _interp_axis_weights(out_size, in_size):
    # F.interpolate bilinear, align_corners=True, 1-D weights.
    wmat = np.zeros((out_size, in_size), np.float32)
    if in_size == 1:
        wmat[:, 0] = 1.0
        return wmat
    scale = (in_size - 1) / (out_size - 1)
    for y in range(out_size):
        src = y * scale
        y0 = min(int(np.floor(src)), in_size - 1)
        y1 = min(y0 + 1, in_size - 1)
        frac = src - y0
        wmat[y, y0] += 1.0 - frac
        wmat[y, y1] += frac
    return wmat


def _upsample_matrix_T(h, w, hp, wp):
    wy = _interp_axis_weights(h, hp)        # (H, hp)
    wx = _interp_axis_weights(w, wp)        # (W, wp)
    u = np.kron(wy, wx)                     # (H*W, hp*wp)
    return np.ascontiguousarray(u.T)        # (S, H*W)


@lru_cache(maxsize=8)   # host-side numpy cache (bounded) -> no device-memory leak
def _ppm_matrices(h, w):
    pts, uts, s_list = [], [], []
    for k in POOL_KERNELS:
        pt, hp, wp = _pool_matrix_T(h, w, k)
        pts.append(pt)
        uts.append(_upsample_matrix_T(h, w, hp, wp))
        s_list.append(int(hp * wp))
    return np.concatenate(pts, axis=1), tuple(uts), tuple(s_list)


# ----------------------------------- helpers ----------------------------------------

def _pick_lane_tile(hw, cap=512):
    """Largest multiple of 128 that divides hw and is <= cap (else the full hw)."""
    best = hw
    t = 128
    while t <= min(hw, cap):
        if hw % t == 0:
            best = t
        t += 128
    return best


def _vmem_limit_bytes():
    """Generation-aware VMEM limit with headroom (v7x: 64 MiB, v5e/v6e: 128 MiB)."""
    try:
        phys = int(pltpu.get_tpu_info().vmem_capacity_bytes)
    except Exception:
        phys = 64 * 1024 * 1024           # conservative fallback (v7x per-TC)
    return max(32 * 1024 * 1024, min(phys * 3 // 4, 96 * 1024 * 1024))


# ------------------------------ kernel 1: pool + conv --------------------------------

def _make_pool_conv_kernel(planes, s_list, s_offsets):
    num_b = len(s_list)

    def kernel(x_ref, pt_ref, w_ref, *rest):
        y_refs = rest[:num_b]
        acc_ref = rest[-1]
        t = pl.program_id(1)

        @pl.when(t == 0)
        def _zero():
            acc_ref[...] = jnp.zeros_like(acc_ref)

        # AvgPool2d for all four branches: one bf16 MXU matmul per lane tile,
        # accumulated in f32 (pool-first ordering, matches PyTorch).
        x_bf = x_ref[...].astype(MXU_DTYPE)                          # (C, T)
        acc_ref[...] += jnp.dot(x_bf, pt_ref[...],
                                preferred_element_type=jnp.float32)  # (C, S_total)

        @pl.when(t == pl.num_programs(1) - 1)
        def _finalize():
            pooled = acc_ref[...]                                    # (C, S_total) f32
            for b in range(num_b):
                off, s_b = s_offsets[b], s_list[b]
                wb = w_ref[b * planes:(b + 1) * planes, :]           # (P, C) f32
                y_refs[b][...] = jnp.dot(wb, pooled[:, off:off + s_b],
                                         preferred_element_type=jnp.float32)

    return kernel


# ---------------------- kernel 2: BN + LeakyReLU + upsample + concat -----------------

def _make_upsample_kernel(n_batch, c_in, planes, s_list):
    num_b = len(s_list)

    def kernel(x_ref, *rest):
        y_refs = rest[:num_b]
        gamma_ref, beta_ref = rest[num_b], rest[num_b + 1]
        ut_refs = rest[num_b + 2: num_b + 2 + num_b]
        out_ref = rest[-1]

        nb = pl.program_id(0)

        # Channel passthrough: first block of torch.cat([x, ppm1..ppm4], dim=1),
        # exact f32 copy of x, lane-dense store.
        out_ref[0:c_in, :] = x_ref[...]

        for b in range(num_b):
            s_b = s_list[b]
            cnt = float(n_batch * s_b)

            # BatchNorm2d training-mode stats over (N, S_b) per channel: two-pass
            # (mean then centered variance), f32, batch axis unrolled statically.
            ssum = jnp.zeros((planes, 1), jnp.float32)
            for i in range(n_batch):
                ssum = ssum + jnp.sum(y_refs[b][i], axis=1, keepdims=True)
            mean = ssum * (1.0 / cnt)
            vsum = jnp.zeros((planes, 1), jnp.float32)
            for i in range(n_batch):
                d = y_refs[b][i] - mean
                vsum = vsum + jnp.sum(d * d, axis=1, keepdims=True)
            var = vsum * (1.0 / cnt)

            g = gamma_ref[b * planes:(b + 1) * planes, :]
            bt = beta_ref[b * planes:(b + 1) * planes, :]
            scale = g * jax.lax.rsqrt(var + BN_EPS)

            # Normalize + LeakyReLU (f32, VPU) for the current batch's pooled map.
            z = (y_refs[b][nb] - mean) * scale + bt                  # (P, S_b)
            a = jnp.maximum(z, LEAKY_SLOPE * z)

            if s_b == 1:
                # 1x1 pooled map: bilinear upsample is a constant broadcast (VPU),
                # no per-batch loop and no K=1 MXU matmul.
                up = a * ut_refs[b][...].astype(jnp.float32)         # (P,1)*(1,T)
            else:
                # bilinear (align_corners=True) upsample: bf16 MXU matmul against
                # the shared U^T lane slice for this tile.
                up = jnp.dot(a.astype(MXU_DTYPE), ut_refs[b][...],
                             preferred_element_type=jnp.float32)     # (P, T)

            out_ref[c_in + b * planes: c_in + (b + 1) * planes, :] = up

    return kernel


# ----------------------------------- PPM forward -------------------------------------

def ppm_forward(x, params):
    # x: (N, inplanes, H, W) float32 (NCHW, like PyTorch)
    # params: list of 4 (conv_w (P,C), bn_gamma (P,1), bn_beta (P,1)) in branch order.
    n, c, h, w = x.shape
    hw = h * w
    planes = params[0][0].shape[0]

    pt_all_np, ut_np, s_list = _ppm_matrices(h, w)
    s_total = int(sum(s_list))
    s_offsets = tuple(int(v) for v in np.cumsum((0,) + s_list)[:-1])

    t_hw = _pick_lane_tile(hw)
    n_t = hw // t_hw
    vmem_limit = _vmem_limit_bytes()

    # Stack the four branches' parameters once.
    w_stack = jnp.concatenate([p[0] for p in params], axis=0)       # (4P, C) f32
    gamma = jnp.concatenate([p[1] for p in params], axis=0)         # (4P, 1)
    beta = jnp.concatenate([p[2] for p in params], axis=0)          # (4P, 1)

    x3 = x.reshape(n, c, hw)                                        # free, no transpose
    pt_all = jnp.asarray(pt_all_np, dtype=MXU_DTYPE)                # (HW, S_total)
    uts = [jnp.asarray(u, dtype=MXU_DTYPE) for u in ut_np]          # (S_b, HW) each

    # ---- kernel 1: AvgPool (accumulated over lane tiles) + 1x1 conv ----
    y_branches = pl.pallas_call(
        _make_pool_conv_kernel(planes, s_list, s_offsets),
        out_shape=tuple(jax.ShapeDtypeStruct((n, planes, s_b), jnp.float32)
                        for s_b in s_list),
        grid=(n, n_t),
        in_specs=[
            pl.BlockSpec((pl.Squeezed(), c, t_hw), lambda nn, tt: (nn, 0, tt)),
            pl.BlockSpec((t_hw, s_total), lambda nn, tt: (tt, 0)),
            pl.BlockSpec((4 * planes, c), lambda nn, tt: (0, 0)),
        ],
        out_specs=tuple(pl.BlockSpec((pl.Squeezed(), planes, s_b),
                                     lambda nn, tt: (nn, 0, 0)) for s_b in s_list),
        scratch_shapes=[pltpu.VMEM((c, s_total), jnp.float32)],
        compiler_params=pltpu.CompilerParams(
            dimension_semantics=("parallel", "arbitrary"),
            vmem_limit_bytes=vmem_limit),
    )(x3, pt_all, w_stack)

    # ---- kernel 2: BN + LeakyReLU + bilinear upsample + concat write ----
    out3 = pl.pallas_call(
        _make_upsample_kernel(n, c, planes, s_list),
        out_shape=jax.ShapeDtypeStruct((n, 2 * c, hw), jnp.float32),
        grid=(n, n_t),
        in_specs=(
            [pl.BlockSpec((pl.Squeezed(), c, t_hw), lambda nn, tt: (nn, 0, tt))]
            + [pl.BlockSpec((n, planes, s_b), lambda nn, tt: (0, 0, 0)) for s_b in s_list]
            + [pl.BlockSpec((4 * planes, 1), lambda nn, tt: (0, 0))] * 2
            + [pl.BlockSpec((s_b, t_hw), lambda nn, tt: (0, tt)) for s_b in s_list]),
        out_specs=pl.BlockSpec((pl.Squeezed(), 2 * c, t_hw), lambda nn, tt: (nn, 0, tt)),
        compiler_params=pltpu.CompilerParams(
            dimension_semantics=("parallel", "parallel"),
            vmem_limit_bytes=vmem_limit),
    )(x3, *y_branches, gamma, beta, *uts)

    # (N, 2C, HW) -> (N, 2C, H, W), identical to torch.cat([x, ppm1..ppm4], dim=1).
    return out3.reshape(n, 2 * c, h, w)


# ------------------ independent pure-JAX f32 reference (same math) -------------------

def ppm_reference(x, params):
    n, c, h, w = x.shape
    outs = [x]
    for k, (wc, gamma, beta) in zip(POOL_KERNELS, params):
        hp = (h - k) // k + 1
        wp = (w - k) // k + 1
        pooled = x[:, :, :hp * k, :wp * k].reshape(n, c, hp, k, wp, k).mean(axis=(3, 5))
        y = jnp.einsum('oc,nchw->nohw', wc, pooled)
        mean = jnp.mean(y, axis=(0, 2, 3), keepdims=True)
        var = jnp.mean((y - mean) ** 2, axis=(0, 2, 3), keepdims=True)
        z = ((y - mean) * jax.lax.rsqrt(var + BN_EPS) * gamma.reshape(1, -1, 1, 1)
             + beta.reshape(1, -1, 1, 1))
        a = jnp.where(z >= 0, z, LEAKY_SLOPE * z)
        wy = jnp.asarray(_interp_axis_weights(h, hp))
        wx = jnp.asarray(_interp_axis_weights(w, wp))
        up = jnp.einsum('hi,noij,wj->nohw', wy, a, wx)
        outs.append(up)
    return jnp.concatenate(outs, axis=1)


# --------------------------------------- main -----------------------------------------

if __name__ == "__main__":
    INPLANES = 8
    PLANES = INPLANES // 4
    N, H, W = 2, 32, 32     # spatial >= 32 for AvgPool2d((32,32)); HW=1024 is 128-aligned

    key = jax.random.PRNGKey(0)
    kx, kw, kg, kb = jax.random.split(key, 4)
    x = jax.random.normal(kx, (N, INPLANES, H, W), jnp.float32)
    # Per-batch +/-1 offset keeps the tiny-batch BN statistics well conditioned
    # (the k=32 branch normalizes over only N*1 samples), so the bf16-matmul vs
    # f32-reference comparison below is not dominated by a near-degenerate variance.
    x = x + (2.0 * jnp.arange(N, dtype=jnp.float32) - (N - 1)).reshape(N, 1, 1, 1)

    wkeys = jax.random.split(kw, 4)
    gkeys = jax.random.split(kg, 4)
    bkeys = jax.random.split(kb, 4)
    params = []
    for i in range(4):
        wc = 0.2 * jax.random.normal(wkeys[i], (PLANES, INPLANES), jnp.float32)
        gamma = 1.0 + 0.1 * jax.random.normal(gkeys[i], (PLANES, 1), jnp.float32)
        beta = 0.1 * jax.random.normal(bkeys[i], (PLANES, 1), jnp.float32)
        params.append((wc, gamma, beta))

    out = jax.block_until_ready(ppm_forward(x, params))
    assert out.shape == (N, 2 * INPLANES, H, W), out.shape
    assert bool(jnp.all(jnp.isfinite(out)))

    ref = jax.block_until_ready(ppm_reference(x, params))
    max_err = float(jnp.max(jnp.abs(out - ref)))
    assert bool(jnp.allclose(out, ref, rtol=2e-2, atol=2e-2)), max_err

    print("KERNEL_OK")
</pallas_src>

<mosaic_0001>
module attributes {stable_mosaic.version = 11 : i64} {
  func.func @kernel(%arg0: i32, %arg1: i32, %arg2: memref<1x8x512xf32, #tpu.memory_space<vmem>>, %arg3: memref<512x50xbf16, #tpu.memory_space<vmem>>, %arg4: memref<8x8xf32, #tpu.memory_space<vmem>>, %arg5: memref<1x2x1xf32, #tpu.memory_space<vmem>>, %arg6: memref<1x2x4xf32, #tpu.memory_space<vmem>>, %arg7: memref<1x2x9xf32, #tpu.memory_space<vmem>>, %arg8: memref<1x2x36xf32, #tpu.memory_space<vmem>>, %arg9: memref<8x50xf32, #tpu.memory_space<vmem>>) attributes {dimension_semantics = [#tpu.dimension_semantics<parallel>, #tpu.dimension_semantics<arbitrary>], iteration_bounds = array<i64: 2, 2>, scalar_prefetch = 0 : i64, scratch_operands = 1 : i64, tpu.core_type = #tpu.core_type<tc>, window_params = [{transform_indices = @transform_0, window_bounds = array<i64: 1, 8, 512>}, {transform_indices = @transform_1, window_bounds = array<i64: 512, 50>}, {pipeline_mode = #tpu.pipeline_mode<synchronous>, transform_indices = @transform_2, window_bounds = array<i64: 8, 8>}, {transform_indices = @transform_3, window_bounds = array<i64: 1, 2, 1>}, {transform_indices = @transform_4, window_bounds = array<i64: 1, 2, 4>}, {transform_indices = @transform_5, window_bounds = array<i64: 1, 2, 9>}, {transform_indices = @transform_6, window_bounds = array<i64: 1, 2, 36>}]} {
    %c0_i32 = arith.constant 0 : i32
    %0 = arith.cmpi eq, %arg1, %c0_i32 : i32
    %1 = arith.extui %0 : i1 to i32
    %c0_i32_0 = arith.constant 0 : i32
    %2 = arith.cmpi ne, %1, %c0_i32_0 : i32
    scf.if %2 {
      %cst_10 = arith.constant 0.000000e+00 : f32
      %14 = vector.broadcast %cst_10 : f32 to vector<8x50xf32>
      %c0_11 = arith.constant 0 : index
      %c0_12 = arith.constant 0 : index
      %15 = vector.load %arg9[%c0_11, %c0_12] : memref<8x50xf32, #tpu.memory_space<vmem>>, vector<8x50xf32>
      tpu.vector_store %arg9[%c0_11, %c0_12], %14 {strides = array<i32>} : memref<8x50xf32, #tpu.memory_space<vmem>>, vector<8x50xf32>,
    } else {
    }
    %c0 = arith.constant 0 : index
    %c0_1 = arith.constant 0 : index
    %c0_2 = arith.constant 0 : index
    %3 = vector.load %arg2[%c0, %c0_1, %c0_2] : memref<1x8x512xf32, #tpu.memory_space<vmem>>, vector<1x8x512xf32>
    %4 = vector.shape_cast %3 : vector<1x8x512xf32> to vector<8x512xf32>
    %5 = arith.truncf %4 : vector<8x512xf32> to vector<8x512xbf16>
    %c0_3 = arith.constant 0 : index
    %c0_4 = arith.constant 0 : index
    %6 = vector.load %arg9[%c0_3, %c0_4] : memref<8x50xf32, #tpu.memory_space<vmem>>, vector<8x50xf32>
    %c0_5 = arith.constant 0 : index
    %c0_6 = arith.constant 0 : index
    %7 = vector.load %arg3[%c0_5, %c0_6] : memref<512x50xbf16, #tpu.memory_space<vmem>>, vector<512x50xbf16>
    %cst = arith.constant dense<0.000000e+00> : vector<8x50xf32>
    %8 = tpu.matmul %5, %7, %cst {dimension_numbers = #tpu.dot_dimension_numbers<[1], [0], [0], [1], [0, 0, 1, 1], [], []>} : vector<8x512xbf16>, vector<512x50xbf16>, vector<8x50xf32> -> vector<8x50xf32>
    %9 = arith.addf %6, %8 : vector<8x50xf32>
    %c0_7 = arith.constant 0 : index
    %c0_8 = arith.constant 0 : index
    %10 = vector.load %arg9[%c0_7, %c0_8] : memref<8x50xf32, #tpu.memory_space<vmem>>, vector<8x50xf32>
    tpu.vector_store %arg9[%c0_7, %c0_8], %9 {strides = array<i32>} : memref<8x50xf32, #tpu.memory_space<vmem>>, vector<8x50xf32>,
    %c1_i32 = arith.constant 1 : i32
    %11 = arith.cmpi eq, %arg1, %c1_i32 : i32
    %12 = arith.extui %11 : i1 to i32
    %c0_i32_9 = arith.constant 0 : i32
    %13 = arith.cmpi ne, %12, %c0_i32_9 : i32
    scf.if %13 {
      %c0_10 = arith.constant 0 : index
      %c0_11 = arith.constant 0 : index
      %14 = vector.load %arg9[%c0_10, %c0_11] : memref<8x50xf32, #tpu.memory_space<vmem>>, vector<8x50xf32>
      %c0_12 = arith.constant 0 : index
      %c0_13 = arith.constant 0 : index
      %15 = vector.load %arg4[%c0_12, %c0_13] : memref<8x8xf32, #tpu.memory_space<vmem>>, vector<2x8xf32>
      %16 = vector.extract_strided_slice %14 {offsets = [0, 0], sizes = [8, 1], strides = [1, 1]} : vector<8x50xf32> to vector<8x1xf32>
      %cst_14 = arith.constant dense<0.000000e+00> : vector<2x1xf32>
      %17 = tpu.matmul %15, %16, %cst_14 {dimension_numbers = #tpu.dot_dimension_numbers<[1], [0], [0], [1], [0, 0, 1, 1], [], []>} : vector<2x8xf32>, vector<8x1xf32>, vector<2x1xf32> -> vector<2x1xf32>
      %c0_15 = arith.constant 0 : index
      %c0_16 = arith.constant 0 : index
      %c0_17 = arith.constant 0 : index
      %18 = vector.load %arg5[%c0_15, %c0_16, %c0_17] : memref<1x2x1xf32, #tpu.memory_space<vmem>>, vector<1x2x1xf32>
      %19 = vector.shape_cast %18 : vector<1x2x1xf32> to vector<2x1xf32>
      %20 = vector.shape_cast %17 : vector<2x1xf32> to vector<1x2x1xf32>
      tpu.vector_store %arg5[%c0_15, %c0_16, %c0_17], %20 {strides = array<i32>} : memref<1x2x1xf32, #tpu.memory_space<vmem>>, vector<1x2x1xf32>,
      %c2 = arith.constant 2 : index
      %c0_18 = arith.constant 0 : index
      %21 = vector.load %arg4[%c2, %c0_18] : memref<8x8xf32, #tpu.memory_space<vmem>>, vector<2x8xf32>
      %22 = vector.extract_strided_slice %14 {offsets = [0, 1], sizes = [8, 4], strides = [1, 1]} : vector<8x50xf32> to vector<8x4xf32>
      %cst_19 = arith.constant dense<0.000000e+00> : vector<2x4xf32>
      %23 = tpu.matmul %21, %22, %cst_19 {dimension_numbers = #tpu.dot_dimension_numbers<[1], [0], [0], [1], [0, 0, 1, 1], [], []>} : vector<2x8xf32>, vector<8x4xf32>, vector<2x4xf32> -> vector<2x4xf32>
      %c0_20 = arith.constant 0 : index
      %c0_21 = arith.constant 0 : index
      %c0_22 = arith.constant 0 : index
      %24 = vector.load %arg6[%c0_20, %c0_21, %c0_22] : memref<1x2x4xf32, #tpu.memory_space<vmem>>, vector<1x2x4xf32>
      %25 = vector.shape_cast %24 : vector<1x2x4xf32> to vector<2x4xf32>
      %26 = vector.shape_cast %23 : vector<2x4xf32> to vector<1x2x4xf32>
      tpu.vector_store %arg6[%c0_20, %c0_21, %c0_22], %26 {strides = array<i32>} : memref<1x2x4xf32, #tpu.memory_space<vmem>>, vector<1x2x4xf32>,
      %c4 = arith.constant 4 : index
      %c0_23 = arith.constant 0 : index
      %27 = vector.load %arg4[%c4, %c0_23] : memref<8x8xf32, #tpu.memory_space<vmem>>, vector<2x8xf32>
      %28 = vector.extract_strided_slice %14 {offsets = [0, 5], sizes = [8, 9], strides = [1, 1]} : vector<8x50xf32> to vector<8x9xf32>
      %cst_24 = arith.constant dense<0.000000e+00> : vector<2x9xf32>
      %29 = tpu.matmul %27, %28, %cst_24 {dimension_numbers = #tpu.dot_dimension_numbers<[1], [0], [0], [1], [0, 0, 1, 1], [], []>} : vector<2x8xf32>, vector<8x9xf32>, vector<2x9xf32> -> vector<2x9xf32>
      %c0_25 = arith.constant 0 : index
      %c0_26 = arith.constant 0 : index
      %c0_27 = arith.constant 0 : index
      %30 = vector.load %arg7[%c0_25, %c0_26, %c0_27] : memref<1x2x9xf32, #tpu.memory_space<vmem>>, vector<1x2x9xf32>
      %31 = vector.shape_cast %30 : vector<1x2x9xf32> to vector<2x9xf32>
      %32 = vector.shape_cast %29 : vector<2x9xf32> to vector<1x2x9xf32>
      tpu.vector_store %arg7[%c0_25, %c0_26, %c0_27], %32 {strides = array<i32>} : memref<1x2x9xf32, #tpu.memory_space<vmem>>, vector<1x2x9xf32>,
      %c6 = arith.constant 6 : index
      %c0_28 = arith.constant 0 : index
      %33 = vector.load %arg4[%c6, %c0_28] : memref<8x8xf32, #tpu.memory_space<vmem>>, vector<2x8xf32>
      %34 = vector.extract_strided_slice %14 {offsets = [0, 14], sizes = [8, 36], strides = [1, 1]} : vector<8x50xf32> to vector<8x36xf32>
      %cst_29 = arith.constant dense<0.000000e+00> : vector<2x36xf32>
      %35 = tpu.matmul %33, %34, %cst_29 {dimension_numbers = #tpu.dot_dimension_numbers<[1], [0], [0], [1], [0, 0, 1, 1], [], []>} : vector<2x8xf32>, vector<8x36xf32>, vector<2x36xf32> -> vector<2x36xf32>
      %c0_30 = arith.constant 0 : index
      %c0_31 = arith.constant 0 : index
      %c0_32 = arith.constant 0 : index
      %36 = vector.load %arg8[%c0_30, %c0_31, %c0_32] : memref<1x2x36xf32, #tpu.memory_space<vmem>>, vector<1x2x36xf32>
      %37 = vector.shape_cast %36 : vector<1x2x36xf32> to vector<2x36xf32>
      %38 = vector.shape_cast %35 : vector<2x36xf32> to vector<1x2x36xf32>
      tpu.vector_store %arg8[%c0_30, %c0_31, %c0_32], %38 {strides = array<i32>} : memref<1x2x36xf32, #tpu.memory_space<vmem>>, vector<1x2x36xf32>,
    } else {
    }
    return
  }
  func.func @transform_0(%arg0: i32, %arg1: i32) -> (i32, i32, i32) {
    %c0_i32 = arith.constant 0 : i32
    %c0_i32_0 = arith.constant 0 : i32
    return %arg0, %c0_i32, %arg1 : i32, i32, i32
  }
  func.func @transform_1(%arg0: i32, %arg1: i32) -> (i32, i32) {
    %c0_i32 = arith.constant 0 : i32
    %c0_i32_0 = arith.constant 0 : i32
    return %arg1, %c0_i32 : i32, i32
  }
  func.func @transform_2(%arg0: i32, %arg1: i32) -> (i32, i32) {
    %c0_i32 = arith.constant 0 : i32
    %c0_i32_0 = arith.constant 0 : i32
    %c0_i32_1 = arith.constant 0 : i32
    return %c0_i32, %c0_i32_0 : i32, i32
  }
  func.func @transform_3(%arg0: i32, %arg1: i32) -> (i32, i32, i32) {
    %c0_i32 = arith.constant 0 : i32
    %c0_i32_0 = arith.constant 0 : i32
    %c0_i32_1 = arith.constant 0 : i32
    return %arg0, %c0_i32, %c0_i32_0 : i32, i32, i32
  }
  func.func @transform_4(%arg0: i32, %arg1: i32) -> (i32, i32, i32) {
    %c0_i32 = arith.constant 0 : i32
    %c0_i32_0 = arith.constant 0 : i32
    %c0_i32_1 = arith.constant 0 : i32
    return %arg0, %c0_i32, %c0_i32_0 : i32, i32, i32
  }
  func.func @transform_5(%arg0: i32, %arg1: i32) -> (i32, i32, i32) {
    %c0_i32 = arith.constant 0 : i32
    %c0_i32_0 = arith.constant 0 : i32
    %c0_i32_1 = arith.constant 0 : i32
    return %arg0, %c0_i32, %c0_i32_0 : i32, i32, i32
  }
  func.func @transform_6(%arg0: i32, %arg1: i32) -> (i32, i32, i32) {
    %c0_i32 = arith.constant 0 : i32
    %c0_i32_0 = arith.constant 0 : i32
    %c0_i32_1 = arith.constant 0 : i32
    return %arg0, %c0_i32, %c0_i32_0 : i32, i32, i32
  }
}

</mosaic_0001>

<llo_original>
// kernel: tpu_custom_call.1
$region0: #{tpu_custom_call.1}
  #allocation0 [shape = 'u32[]', space=smem, size = 0x4, offset = 0x4, fixed_abs, tag = 'smem constant byte address 0x4 - core index']
  #allocation1 [shape = 'u32[144,128]{1,0:T(1,128)}', space=vmem, size = 0x12000, scoped, tag = 'internal scratch']
  #allocation2 [shape = 'f32[8,50]{1,0:T(8,128)}', space=vmem, size = 0x1000, scoped, tag = 'scratch operand']
  %s0 = inlined_call_operand.vmem [shape: f32[2,8,1024], index: 0, kind: input, shape index: {}]
  %s1 = inlined_call_operand.vmem [shape: bf16[1024,50], index: 1, kind: input, shape index: {}]
  %s2 = inlined_call_operand.vmem [shape: f32[8,8], index: 2, kind: input, shape index: {}]
  %s3 = inlined_call_operand.vmem [shape: f32[2,2,1], index: 3, kind: output, shape index: {0}]
  %s4 = inlined_call_operand.hbm [shape: f32[2,2,4], index: 4, kind: output, shape index: {1}]
  %s5 = inlined_call_operand.hbm [shape: f32[2,2,9], index: 5, kind: output, shape index: {2}]
  %s6 = inlined_call_operand.hbm [shape: f32[2,2,36], index: 6, kind: output, shape index: {3}]
  %7 = xla_tuple %s3, %s4, %s5, %s6
  %s8 = sld [smem:[#allocation0]]
  $region77: #{tpu_custom_call.1} parent=0
    _
  %s10 = ssub.s32 1, %s8
  %s11 = scalar_select 0, %s10, %s8
  $region1: #{tpu_custom_call.1} parent=0
    #allocation3 [shape = 'u8[2048]{0}', space=vmem, size = 0x800, scoped, tag = 'output window, operand 1']
    #allocation4 [shape = 's32[2]{0}', space=sflag, size = 0x8, scoped, tag = 'scoped memory for tpu_custom_call.1']
    #allocation5 [shape = 'u8[2048]{0}', space=vmem, size = 0x800, scoped, tag = 'output window, operand 2']
    #allocation6 [shape = 's32[2]{0}', space=sflag, size = 0x8, scoped, tag = 'scoped memory for tpu_custom_call.1']
    #allocation7 [shape = 'u8[2048]{0}', space=vmem, size = 0x800, scoped, tag = 'output window, operand 3']
    %12 = vsyncpa [#allocation4], 0
    %s13 = scalar_lea.sflag [#allocation4], 1
    %14 = vsyncpa %s13, 0
    %15 = vsyncpa [#allocation6], 0
    %s16 = scalar_lea.sflag [#allocation6], 1
    %17 = vsyncpa %s16, 0
    loop: start=0, step=1, limit=6
    $region2: #{tpu_custom_call.1} parent=1 // loop_pre_header
      _
    $region3: #{tpu_custom_call.1} parent=1 // loop_header
      %s19 = sphi 0, %s23
      %p20 = scmp.ge.s32.totalorder %s19, 6
      %s26 = sphi 0, %s38
      %s27 = sphi 0, %s34
      %s28 = sphi 0, %s26
      %s29 = sphi 0, %s27
      %s30 = sphi 0, %s28
      %s31 = sphi 0, %s29
      %s43 = sphi 0, %s45
      %s46 = sphi 0, %s43
      %s47 = sphi 0, %s46
      %s63 = sphi 0, %s47
      %s69 = sphi 0, %s71
      %s72 = sphi 0, %s69
      %s73 = sphi 0, %s72
      %s89 = sphi 0, %s73
      %s93 = sphi 0, %s93
      %s95 = sphi 0, %s93
      %s96 = sphi 0, %s95
      %s110 = sphi 0, %s96
      %s116 = sphi 0, %s118
      %s119 = sphi 0, %s116
      %s120 = sphi 0, %s119
      %s136 = sphi 0, %s120
      %s142 = sphi 0, %s144
      %s145 = sphi 0, %s142
      %s146 = sphi 0, %s145
      %s162 = sphi 0, %s146
      %s168 = sphi 0, %s170
      %s171 = sphi 0, %s168
      %s172 = sphi 0, %s171
      %s188 = sphi 0, %s172
      %s194 = sphi 0, %s196
      %s197 = sphi 0, %s194
      %s198 = sphi 0, %s197
      %s214 = sphi 0, %s198
    $region4: #{tpu_custom_call.1} parent=1 // loop_header_branch
      %22 = sbr.rel (%p20) target = $region8
    $region5: #{tpu_custom_call.1} parent=1 // loop_body
      %s24 = ssub.s32 %s19, 1
      %s25 = ssub.s32 %s19, 2
      %s32 = sadd.s32 1, %s27
      %p33 = scmp.ge.s32.totalorder %s32, 2
      %s34 = scalar_select %p33, 0, %s32
      %s35 = sadd.s32 1, %s26
      %s36 = scalar_select %p33, %s35, %s26
      %p37 = scmp.ge.s32.totalorder %s36, 2
      %s38 = scalar_select %p37, 0, %s36
      %s39 = ssub.s32 %s26, %s38
      %s40 = ssub.s32 %s27, %s34
      %s41 = sor.u32 %s39, %s40
      %p42 = scmp.eq.s32.totalorder %s41, 0
      %s44 = sadd.s32 %s43, 1
      %s45 = scalar_select %p42, %s43, %s44
      %p48 = pneg %p42
      %p49 = scmp.eq.s32.totalorder %s19, 3
      %p50 = por %p48, %p49
      %p51 = scmp.ne.s32.totalorder %s43, %s46
      %p52 = scmp.eq.s32.totalorder %s19, 0
      %p53 = por %p51, %p52
      %p54 = scmp.ne.s32.totalorder %s43, %s46
      %p55 = scmp.eq.s32.totalorder %s24, 3
      %p56 = por %p54, %p55
      %p57 = scmp.ne.s32.totalorder %s46, %s47
      %p58 = scmp.eq.s32.totalorder %s24, 0
      %p59 = por %p57, %p58
      %p60 = scmp.ne.s32.totalorder %s46, %s47
      %p61 = scmp.eq.s32.totalorder %s25, 3
      %p62 = por %p60, %p61
      %p64 = scmp.ne.s32.totalorder %s47, %s63
      %p65 = scmp.eq.s32.totalorder %s25, 0
      %p66 = por %p64, %p65
      %s67 = ssub.s32 %s27, %s34
      %p68 = scmp.eq.s32.totalorder %s67, 0
      %s70 = sadd.s32 %s69, 1
      %s71 = scalar_select %p68, %s69, %s70
      %p74 = pneg %p68
      %p75 = scmp.eq.s32.totalorder %s19, 3
      %p76 = por %p74, %p75
      %p77 = scmp.ne.s32.totalorder %s69, %s72
      %p78 = scmp.eq.s32.totalorder %s19, 0
      %p79 = por %p77, %p78
      %p80 = scmp.ne.s32.totalorder %s69, %s72
      %p81 = scmp.eq.s32.totalorder %s24, 3
      %p82 = por %p80, %p81
      %p83 = scmp.ne.s32.totalorder %s72, %s73
      %p84 = scmp.eq.s32.totalorder %s24, 0
      %p85 = por %p83, %p84
      %p86 = scmp.ne.s32.totalorder %s72, %s73
      %p87 = scmp.eq.s32.totalorder %s25, 3
      %p88 = por %p86, %p87
      %p90 = scmp.ne.s32.totalorder %s73, %s89
      %p91 = scmp.eq.s32.totalorder %s25, 0
      %p92 = por %p90, %p91
      %s94 = sadd.s32 %s93, 1
      %p97 = scmp.eq.s32.totalorder %s19, 3
      %p98 = scmp.ne.s32.totalorder %s93, %s95
      %p99 = scmp.eq.s32.totalorder %s19, 0
      %p100 = por %p98, %p99
      %p101 = scmp.ne.s32.totalorder %s93, %s95
      %p102 = scmp.eq.s32.totalorder %s24, 3
      %p103 = por %p101, %p102
      %p104 = scmp.ne.s32.totalorder %s95, %s96
      %p105 = scmp.eq.s32.totalorder %s24, 0
      %p106 = por %p104, %p105
      %p107 = scmp.ne.s32.totalorder %s95, %s96
      %p108 = scmp.eq.s32.totalorder %s25, 3
      %p109 = por %p107, %p108
      %p111 = scmp.ne.s32.totalorder %s96, %s110
      %p112 = scmp.eq.s32.totalorder %s25, 0
      %p113 = por %p111, %p112
      %s114 = ssub.s32 %s26, %s38
      %p115 = scmp.eq.s32.totalorder %s114, 0
      %s117 = sadd.s32 %s116, 1
      %s118 = scalar_select %p115, %s116, %s117
      %p121 = pneg %p115
      %p122 = scmp.eq.s32.totalorder %s19, 3
      %p123 = por %p121, %p122
      %p124 = scmp.ne.s32.totalorder %s116, %s119
      %p125 = scmp.eq.s32.totalorder %s19, 0
      %p126 = por %p124, %p125
      %p127 = scmp.ne.s32.totalorder %s116, %s119
      %p128 = scmp.eq.s32.totalorder %s24, 3
      %p129 = por %p127, %p128
      %p130 = scmp.ne.s32.totalorder %s119, %s120
      %p131 = scmp.eq.s32.totalorder %s24, 0
      %p132 = por %p130, %p131
      %p133 = scmp.ne.s32.totalorder %s119, %s120
      %p134 = scmp.eq.s32.totalorder %s25, 3
      %p135 = por %p133, %p134
      %p137 = scmp.ne.s32.totalorder %s120, %s136
      %p138 = scmp.eq.s32.totalorder %s25, 0
      %p139 = por %p137, %p138
      %s140 = ssub.s32 %s26, %s38
      %p141 = scmp.eq.s32.totalorder %s140, 0
      %s143 = sadd.s32 %s142, 1
      %s144 = scalar_select %p141, %s142, %s143
      %p147 = pneg %p141
      %p148 = scmp.eq.s32.totalorder %s19, 3
      %p149 = por %p147, %p148
      %p150 = scmp.ne.s32.totalorder %s142, %s145
      %p151 = scmp.eq.s32.totalorder %s19, 0
      %p152 = por %p150, %p151
      %p153 = scmp.ne.s32.totalorder %s142, %s145
      %p154 = scmp.eq.s32.totalorder %s24, 3
      %p155 = por %p153, %p154
      %p156 = scmp.ne.s32.totalorder %s145, %s146
      %p157 = scmp.eq.s32.totalorder %s24, 0
      %p158 = por %p156, %p157
      %p159 = scmp.ne.s32.totalorder %s145, %s146
      %p160 = scmp.eq.s32.totalorder %s25, 3
      %p161 = por %p159, %p160
      %p163 = scmp.ne.s32.totalorder %s146, %s162
      %p164 = scmp.eq.s32.totalorder %s25, 0
      %p165 = por %p163, %p164
      %s166 = ssub.s32 %s26, %s38
      %p167 = scmp.eq.s32.totalorder %s166, 0
      %s169 = sadd.s32 %s168, 1
      %s170 = scalar_select %p167, %s168, %s169
      %p173 = pneg %p167
      %p174 = scmp.eq.s32.totalorder %s19, 3
      %p175 = por %p173, %p174
      %p176 = scmp.ne.s32.totalorder %s168, %s171
      %p177 = scmp.eq.s32.totalorder %s19, 0
      %p178 = por %p176, %p177
      %p179 = scmp.ne.s32.totalorder %s168, %s171
      %p180 = scmp.eq.s32.totalorder %s24, 3
      %p181 = por %p179, %p180
      %p182 = scmp.ne.s32.totalorder %s171, %s172
      %p183 = scmp.eq.s32.totalorder %s24, 0
      %p184 = por %p182, %p183
      %p185 = scmp.ne.s32.totalorder %s171, %s172
      %p186 = scmp.eq.s32.totalorder %s25, 3
      %p187 = por %p185, %p186
      %p189 = scmp.ne.s32.totalorder %s172, %s188
      %p190 = scmp.eq.s32.totalorder %s25, 0
      %p191 = por %p189, %p190
      %s192 = ssub.s32 %s26, %s38
      %p193 = scmp.eq.s32.totalorder %s192, 0
      %s195 = sadd.s32 %s194, 1
      %s196 = scalar_select %p193, %s194, %s195
      %p199 = pneg %p193
      %p200 = scmp.eq.s32.totalorder %s19, 3
      %p201 = por %p199, %p200
      %p202 = scmp.ne.s32.totalorder %s194, %s197
      %p203 = scmp.eq.s32.totalorder %s19, 0
      %p204 = por %p202, %p203
      %p205 = scmp.ne.s32.totalorder %s194, %s197
      %p206 = scmp.eq.s32.totalorder %s24, 3
      %p207 = por %p205, %p206
      %p208 = scmp.ne.s32.totalorder %s197, %s198
      %p209 = scmp.eq.s32.totalorder %s24, 0
      %p210 = por %p208, %p209
      %p211 = scmp.ne.s32.totalorder %s197, %s198
      %p212 = scmp.eq.s32.totalorder %s25, 3
      %p213 = por %p211, %p212
      %p215 = scmp.ne.s32.totalorder %s198, %s214
      %p216 = scmp.eq.s32.totalorder %s25, 0
      %p217 = por %p215, %p216
      %p218 = scmp.le.s32.totalorder 1, %s19
      %p219 = scmp.lt.s32.totalorder %s19, 5
      %p220 = pnand %p218, %p219
      %p221 = pneg %p220
      // Predicated region
      $region9: #{tpu_custom_call.1} parent=5 // pred_check
        _
      $region10: #{tpu_custom_call.1} parent=5 // pred_check_branch
        %223 = sbr.rel (%p220) target = $region12
      $region11: #{tpu_custom_call.1} parent=5 // pred_region
        %s224 = ssub.s32 %s19, 1
        // Predicated region
        $region13: #{tpu_custom_call.1} parent=11 // pred_check
          %p225 = pneg %p106
        $region14: #{tpu_custom_call.1} parent=11 // pred_check_branch
          %227 = sbr.rel (%p225) target = $region16
        $region15: #{tpu_custom_call.1} parent=11 // pred_region
          _
        $region16: #{tpu_custom_call.1} parent=11 // pred_fallthru
          _
      $region12: #{tpu_custom_call.1} parent=5 // pred_fallthru
        _
      %p228 = scmp.lt.s32.totalorder %s19, 4
      // Predicated region
      $region17: #{tpu_custom_call.1} parent=5 // pred_check
        %p229 = pneg %p228
      $region18: #{tpu_custom_call.1} parent=5 // pred_check_branch
        %231 = sbr.rel (%p229) target = $region20
      $region19: #{tpu_custom_call.1} parent=5 // pred_region
        // Predicated region
        $region21: #{tpu_custom_call.1} parent=19 // pred_check
          %p232 = pneg %p53
        $region22: #{tpu_custom_call.1} parent=19 // pred_check_branch
          %234 = sbr.rel (%p232) target = $region24
        $region23: #{tpu_custom_call.1} parent=19 // pred_region
          %s235 = smul.u32 4, %s27
          %p236 = scmp.lt.s32.totalorder %s26, 1
          %s237 = scalar_select %p236, %s26, 1
          %p238 = scmp.lt.s32.totalorder %s235, 7
          %s239 = scalar_select %p238, %s235, 7
          %s240 = smul.addr %s237, 8
          %s241 = sadd.s32 %s239, %s240
          %s242 = smul.addr %s241, 8
          %s243 = scalar_lea.vmem %s0, %s242
          %s244 = smul.u32 4, %s27
        $region24: #{tpu_custom_call.1} parent=19 // pred_fallthru
          _
        // Predicated region
        $region25: #{tpu_custom_call.1} parent=19 // pred_check
          %p245 = pneg %p79
        $region26: #{tpu_custom_call.1} parent=19 // pred_check_branch
          %247 = sbr.rel (%p245) target = $region28
        $region27: #{tpu_custom_call.1} parent=19 // pred_region
          %s248 = smul.u32 64, %s27
          %p249 = scmp.lt.s32.totalorder %s248, 127
          %s250 = scalar_select %p249, %s248, 127
          %s251 = smul.addr %s250, 4
          %s252 = scalar_lea.vmem %s1, %s251
          %s253 = smul.u32 64, %s27
        $region28: #{tpu_custom_call.1} parent=19 // pred_fallthru
          _
      $region20: #{tpu_custom_call.1} parent=5 // pred_fallthru
        _
      %p254 = scmp.le.s32.totalorder 1, %s19
      %p255 = scmp.lt.s32.totalorder %s19, 5
      %p256 = pnand %p254, %p255
      %p257 = pneg %p256
      // Predicated region
      $region29: #{tpu_custom_call.1} parent=5 // pred_check
        _
      $region30: #{tpu_custom_call.1} parent=5 // pred_check_branch
        %259 = sbr.rel (%p256) target = $region32
      $region31: #{tpu_custom_call.1} parent=5 // pred_region
        %s260 = ssub.s32 %s19, 1
        %s261 = smul.u32 4, %s29
        %p262 = scmp.lt.s32.totalorder %s28, 1
        %s263 = scalar_select %p262, %s28, 1
        %p264 = scmp.lt.s32.totalorder %s261, 7
        %s265 = scalar_select %p264, %s261, 7
        %s266 = smul.addr %s263, 8
        %s267 = sadd.s32 %s265, %s266
        %s268 = smul.addr %s267, 8
        %s269 = scalar_lea.vmem %s0, %s268
        %p270 = pneg %p59
        %p271 = pneg %p56
        %s272 = smul.u32 64, %s29
        %p273 = scmp.lt.s32.totalorder %s272, 127
        %s274 = scalar_select %p273, %s272, 127
        %s275 = smul.addr %s274, 4
        %s276 = scalar_lea.vmem %s1, %s275
        %p277 = pneg %p85
        %p278 = pneg %p82
        %p279 = pneg %p106
        %p280 = pneg %p103
        %p281 = pneg %p132
        %p282 = pneg %p129
        %p283 = scmp.lt.s32.totalorder %s28, 1
        %s284 = scalar_select %p283, %s28, 1
        %s285 = smul.addr %s284, 2
        %s286 = scalar_lea.vmem %s3, %s285
        %p287 = pneg %p158
        %p288 = pneg %p155
        %s289 = sand.u32 %s145, 1
        %s290 = scalar_lea.sflag [#allocation4], %s289
        %s291 = sand.u32 %s145, 1
        %s292 = smul.addr %s291, 2
        %s293 = scalar_lea.vmem [#allocation3], %s292
        %p294 = pneg %p184
        %p295 = pneg %p181
        %s296 = sand.u32 %s24, 1
        %s297 = scalar_lea.sflag [#allocation6], %s296
        %s298 = sand.u32 %s171, 1
        %s299 = smul.addr %s298, 2
        %s300 = scalar_lea.vmem [#allocation5], %s299
        %p301 = pneg %p210
        %p302 = pneg %p207
        %s303 = sand.u32 %s24, 1
        %s304 = scalar_lea.sflag [#allocation6], %s303
        %s305 = sand.u32 %s197, 1
        %s306 = smul.addr %s305, 2
        %s307 = scalar_lea.vmem [#allocation7], %s306
        %s308 = smul.u32 4, %s29
        %p309 = scmp.lt.s32.totalorder %s28, 1
        %s310 = scalar_select %p309, %s28, 1
        %p311 = scmp.lt.s32.totalorder %s308, 7
        %s312 = scalar_select %p311, %s308, 7
        %s313 = smul.addr %s310, 8
        %s314 = sadd.s32 %s312, %s313
        %s315 = smul.addr %s314, 8
        %s316 = scalar_lea.vmem %s0, %s315
        %s317 = smul.u32 4, %s29
        %s318 = smul.u32 64, %s29
        %p319 = scmp.lt.s32.totalorder %s318, 127
        %s320 = scalar_select %p319, %s318, 127
        %s321 = smul.addr %s320, 4
        %s322 = scalar_lea.vmem %s1, %s321
        %s323 = smul.u32 64, %s29
        %p324 = scmp.lt.s32.totalorder %s28, 1
        %s325 = scalar_select %p324, %s28, 1
        %s326 = smul.addr %s325, 2
        %s327 = scalar_lea.vmem %s3, %s326
        %p329 = scmp.eq.s32.totalorder %s29, 0
        // Predicated region
        $region33: #{tpu_custom_call.1} parent=31 // pred_check
          %p330 = pneg %p329
        $region34: #{tpu_custom_call.1} parent=31 // pred_check_branch
          %332 = sbr.rel (%p330) target = $region36
        $region35: #{tpu_custom_call.1} parent=31 // pred_region
          %vm333 = vcmask 408576
          %334 = vst.msk [vmem:[#allocation2] sm:$0xff] %vm333, 0.0
        $region36: #{tpu_custom_call.1} parent=31 // pred_fallthru
          _
        %v335 = vld [vmem:[%s316] sm:$0xff]
        %v336 = vld [vmem:[%s316 + $0x8] sm:$0xff]
        %v337 = vld [vmem:[%s316 + $0x10] sm:$0xff]
        %v338 = vld [vmem:[%s316 + $0x18] sm:$0xff]
        %v339 = vpack.c.bf16 %v335, %v335
        %v340 = vpack.c.bf16 %v336, %v336
        %v341 = vpack.c.bf16 %v337, %v337
        %v342 = vpack.c.bf16 %v338, %v338
        %v343 = vld [vmem:[#allocation2] sm:$0xff]
        %v344 = vld [vmem:[%s322] sm:$0xf]
        %v345 = vld [vmem:[%s322 + $0x4] sm:$0xf]
        %v346 = vld [vmem:[%s322 + $0x8] sm:$0xf]
        %v347 = vld [vmem:[%s322 + $0xc] sm:$0xf]
        %v348 = vld [vmem:[%s322 + $0x10] sm:$0xf]
        %v349 = vld [vmem:[%s322 + $0x14] sm:$0xf]
        %v350 = vld [vmem:[%s322 + $0x18] sm:$0xf]
        %v351 = vld [vmem:[%s322 + $0x1c] sm:$0xf]
        %v352 = vld [vmem:[%s322 + $0x20] sm:$0xf]
        %v353 = vld [vmem:[%s322 + $0x24] sm:$0xf]
        %v354 = vld [vmem:[%s322 + $0x28] sm:$0xf]
        %v355 = vld [vmem:[%s322 + $0x2c] sm:$0xf]
        %v356 = vld [vmem:[%s322 + $0x30] sm:$0xf]
        %v357 = vld [vmem:[%s322 + $0x34] sm:$0xf]
        %v358 = vld [vmem:[%s322 + $0x38] sm:$0xf]
        %v359 = vld [vmem:[%s322 + $0x3c] sm:$0xf]
        %v360 = vld [vmem:[%s322 + $0x40] sm:$0xf]
        %v361 = vld [vmem:[%s322 + $0x44] sm:$0xf]
        %v362 = vld [vmem:[%s322 + $0x48] sm:$0xf]
        %v363 = vld [vmem:[%s322 + $0x4c] sm:$0xf]
        %v364 = vld [vmem:[%s322 + $0x50] sm:$0xf]
        %v365 = vld [vmem:[%s322 + $0x54] sm:$0xf]
        %v366 = vld [vmem:[%s322 + $0x58] sm:$0xf]
        %v367 = vld [vmem:[%s322 + $0x5c] sm:$0xf]
        %v368 = vld [vmem:[%s322 + $0x60] sm:$0xf]
        %v369 = vld [vmem:[%s322 + $0x64] sm:$0xf]
        %v370 = vld [vmem:[%s322 + $0x68] sm:$0xf]
        %v371 = vld [vmem:[%s322 + $0x6c] sm:$0xf]
        %v372 = vld [vmem:[%s322 + $0x70] sm:$0xf]
        %v373 = vld [vmem:[%s322 + $0x74] sm:$0xf]
        %v374 = vld [vmem:[%s322 + $0x78] sm:$0xf]
        %v375 = vld [vmem:[%s322 + $0x7c] sm:$0xf]
        %v376 = vld [vmem:[%s322 + $0x80] sm:$0xf]
        %v377 = vld [vmem:[%s322 + $0x84] sm:$0xf]
        %v378 = vld [vmem:[%s322 + $0x88] sm:$0xf]
        %v379 = vld [vmem:[%s322 + $0x8c] sm:$0xf]
        %v380 = vld [vmem:[%s322 + $0x90] sm:$0xf]
        %v381 = vld [vmem:[%s322 + $0x94] sm:$0xf]
        %v382 = vld [vmem:[%s322 + $0x98] sm:$0xf]
        %v383 = vld [vmem:[%s322 + $0x9c] sm:$0xf]
        %v384 = vld [vmem:[%s322 + $0xa0] sm:$0xf]
        %v385 = vld [vmem:[%s322 + $0xa4] sm:$0xf]
        %v386 = vld [vmem:[%s322 + $0xa8] sm:$0xf]
        %v387 = vld [vmem:[%s322 + $0xac] sm:$0xf]
        %v388 = vld [vmem:[%s322 + $0xb0] sm:$0xf]
        %v389 = vld [vmem:[%s322 + $0xb4] sm:$0xf]
        %v390 = vld [vmem:[%s322 + $0xb8] sm:$0xf]
        %v391 = vld [vmem:[%s322 + $0xbc] sm:$0xf]
        %v392 = vld [vmem:[%s322 + $0xc0] sm:$0xf]
        %v393 = vld [vmem:[%s322 + $0xc4] sm:$0xf]
        %v394 = vld [vmem:[%s322 + $0xc8] sm:$0xf]
        %v395 = vld [vmem:[%s322 + $0xcc] sm:$0xf]
        %v396 = vld [vmem:[%s322 + $0xd0] sm:$0xf]
        %v397 = vld [vmem:[%s322 + $0xd4] sm:$0xf]
        %v398 = vld [vmem:[%s322 + $0xd8] sm:$0xf]
        %v399 = vld [vmem:[%s322 + $0xdc] sm:$0xf]
        %v400 = vld [vmem:[%s322 + $0xe0] sm:$0xf]
        %v401 = vld [vmem:[%s322 + $0xe4] sm:$0xf]
        %v402 = vld [vmem:[%s322 + $0xe8] sm:$0xf]
        %v403 = vld [vmem:[%s322 + $0xec] sm:$0xf]
        %v404 = vld [vmem:[%s322 + $0xf0] sm:$0xf]
        %v405 = vld [vmem:[%s322 + $0xf4] sm:$0xf]
        %v406 = vld [vmem:[%s322 + $0xf8] sm:$0xf]
        %v407 = vld [vmem:[%s322 + $0xfc] sm:$0xf]
        %v472 = vunpack.c.l.b16 %v344
        %v473 = vunpack.c.l.b16 %v345
        %v474 = vunpack.c.l.b16 %v346
        %v475 = vunpack.c.l.b16 %v347
        %v476 = vunpack.c.l.b16 %v348
        %v477 = vunpack.c.l.b16 %v349
        %v478 = vunpack.c.l.b16 %v350
        %v479 = vunpack.c.l.b16 %v351
        %v480 = vunpack.c.l.b16 %v352
        %v481 = vunpack.c.l.b16 %v353
        %v482 = vunpack.c.l.b16 %v354
        %v483 = vunpack.c.l.b16 %v355
        %v484 = vunpack.c.l.b16 %v356
        %v485 = vunpack.c.l.b16 %v357
        %v486 = vunpack.c.l.b16 %v358
        %v487 = vunpack.c.l.b16 %v359
        %v488 = vunpack.c.l.b16 %v360
        %v489 = vunpack.c.l.b16 %v361
        %v490 = vunpack.c.l.b16 %v362
        %v491 = vunpack.c.l.b16 %v363
        %v492 = vunpack.c.l.b16 %v364
        %v493 = vunpack.c.l.b16 %v365
        %v494 = vunpack.c.l.b16 %v366
        %v495 = vunpack.c.l.b16 %v367
        %v496 = vunpack.c.l.b16 %v368
        %v497 = vunpack.c.l.b16 %v369
        %v498 = vunpack.c.l.b16 %v370
        %v499 = vunpack.c.l.b16 %v371
        %v500 = vunpack.c.l.b16 %v372
        %v501 = vunpack.c.l.b16 %v373
        %v502 = vunpack.c.l.b16 %v374
        %v503 = vunpack.c.l.b16 %v375
        %v504 = vunpack.c.l.b16 %v376
        %v505 = vunpack.c.l.b16 %v377
        %v506 = vunpack.c.l.b16 %v378
        %v507 = vunpack.c.l.b16 %v379
        %v508 = vunpack.c.l.b16 %v380
        %v509 = vunpack.c.l.b16 %v381
        %v510 = vunpack.c.l.b16 %v382
        %v511 = vunpack.c.l.b16 %v383
        %v512 = vunpack.c.l.b16 %v384
        %v513 = vunpack.c.l.b16 %v385
        %v514 = vunpack.c.l.b16 %v386
        %v515 = vunpack.c.l.b16 %v387
        %v516 = vunpack.c.l.b16 %v388
        %v517 = vunpack.c.l.b16 %v389
        %v518 = vunpack.c.l.b16 %v390
        %v519 = vunpack.c.l.b16 %v391
        %v520 = vunpack.c.l.b16 %v392
        %v521 = vunpack.c.l.b16 %v393
        %v522 = vunpack.c.l.b16 %v394
        %v523 = vunpack.c.l.b16 %v395
        %v524 = vunpack.c.l.b16 %v396
        %v525 = vunpack.c.l.b16 %v397
        %v526 = vunpack.c.l.b16 %v398
        %v527 = vunpack.c.l.b16 %v399
        %v528 = vunpack.c.l.b16 %v400
        %v529 = vunpack.c.l.b16 %v401
        %v530 = vunpack.c.l.b16 %v402
        %v531 = vunpack.c.l.b16 %v403
        %v532 = vunpack.c.l.b16 %v404
        %v533 = vunpack.c.l.b16 %v405
        %v534 = vunpack.c.l.b16 %v406
        %v535 = vunpack.c.l.b16 %v407
        %v536 = vpack.c.b16 %v473, %v472
        %v537 = vpack.c.b16 %v475, %v474
        %v538 = vpack.c.b16 %v477, %v476
        %v539 = vpack.c.b16 %v479, %v478
        %v540 = vpack.c.b16 %v481, %v480
        %v541 = vpack.c.b16 %v483, %v482
        %v542 = vpack.c.b16 %v485, %v484
        %v543 = vpack.c.b16 %v487, %v486
        %v544 = vpack.c.b16 %v489, %v488
        %v545 = vpack.c.b16 %v491, %v490
        %v546 = vpack.c.b16 %v493, %v492
        %v547 = vpack.c.b16 %v495, %v494
        %v548 = vpack.c.b16 %v497, %v496
        %v549 = vpack.c.b16 %v499, %v498
        %v550 = vpack.c.b16 %v501, %v500
        %v551 = vpack.c.b16 %v503, %v502
        %v552 = vpack.c.b16 %v505, %v504
        %v553 = vpack.c.b16 %v507, %v506
        %v554 = vpack.c.b16 %v509, %v508
        %v555 = vpack.c.b16 %v511, %v510
        %v556 = vpack.c.b16 %v513, %v512
        %v557 = vpack.c.b16 %v515, %v514
        %v558 = vpack.c.b16 %v517, %v516
        %v559 = vpack.c.b16 %v519, %v518
        %v560 = vpack.c.b16 %v521, %v520
        %v561 = vpack.c.b16 %v523, %v522
        %v562 = vpack.c.b16 %v525, %v524
        %v563 = vpack.c.b16 %v527, %v526
        %v564 = vpack.c.b16 %v529, %v528
        %v565 = vpack.c.b16 %v531, %v530
        %v566 = vpack.c.b16 %v533, %v532
        %v567 = vpack.c.b16 %v535, %v534
        %600 = vmatprep.subr.bf16.mxu0 0
        %601 = vmatpush1.bf16.msra.mxu0 %v536
        %602 = vmatprep.subr.bf16.mxu0 0
        %603 = vmatpush1.bf16.msra.mxu0 %v537
        %604 = vmatprep.subr.bf16.mxu0 0
        %605 = vmatpush1.bf16.msra.mxu0 %v538
        %606 = vmatprep.subr.bf16.mxu0 0
        %607 = vmatpush1.bf16.msra.mxu0 %v539
        %608 = vmatprep.subr.bf16.mxu0 0
        %609 = vmatpush1.bf16.msra.mxu0 %v540
        %610 = vmatprep.subr.bf16.mxu0 0
        %611 = vmatpush1.bf16.msra.mxu0 %v541
        %612 = vmatprep.subr.bf16.mxu0 0
        %613 = vmatpush1.bf16.msra.mxu0 %v542
        %614 = vmatprep.subr.bf16.mxu0 0
        %615 = vmatpush1.bf16.msra.mxu0 %v543
        %616 = vmatprep.subr.bf16.mxu0 0
        %617 = vmatpush1.bf16.msra.mxu0 %v544
        %618 = vmatprep.subr.bf16.mxu0 0
        %619 = vmatpush1.bf16.msra.mxu0 %v545
        %620 = vmatprep.subr.bf16.mxu0 0
        %621 = vmatpush1.bf16.msra.mxu0 %v546
        %622 = vmatprep.subr.bf16.mxu0 0
        %623 = vmatpush1.bf16.msra.mxu0 %v547
        %624 = vmatprep.subr.bf16.mxu0 0
        %625 = vmatpush1.bf16.msra.mxu0 %v548
        %626 = vmatprep.subr.bf16.mxu0 0
        %627 = vmatpush1.bf16.msra.mxu0 %v549
        %628 = vmatprep.subr.bf16.mxu0 0
        %629 = vmatpush1.bf16.msra.mxu0 %v550
        %630 = vmatprep.subr.bf16.mxu0 0
        %631 = vmatpush1.bf16.msra.mxu0 %v551
        %632 = vmatprep.mubr.bf16.mxu0 %v340
        %633 = vmatmul.mubr.bf16.gmra.mrb[0].mxu0 %v339
        %v634 = vpop.f32.mrb[0].mxu0
        %v635 = vadd.f32 0.0, %v634
        %v636 = vpop.f32.mrb[0].mxu0
        %v637 = vpop.f32.mrb[0].mxu0
        %v638 = vpop.f32.mrb[0].mxu0
        %639 = vdwg.mxu0
        %640 = vmatprep.subr.bf16.mxu0 0
        %641 = vmatpush1.bf16.msra.mxu0 %v552
        %642 = vmatprep.subr.bf16.mxu0 0
        %643 = vmatpush1.bf16.msra.mxu0 %v553
        %644 = vmatprep.subr.bf16.mxu0 0
        %645 = vmatpush1.bf16.msra.mxu0 %v554
        %646 = vmatprep.subr.bf16.mxu0 0
        %647 = vmatpush1.bf16.msra.mxu0 %v555
        %648 = vmatprep.subr.bf16.mxu0 0
        %649 = vmatpush1.bf16.msra.mxu0 %v556
        %650 = vmatprep.subr.bf16.mxu0 0
        %651 = vmatpush1.bf16.msra.mxu0 %v557
        %652 = vmatprep.subr.bf16.mxu0 0
        %653 = vmatpush1.bf16.msra.mxu0 %v558
        %654 = vmatprep.subr.bf16.mxu0 0
        %655 = vmatpush1.bf16.msra.mxu0 %v559
        %656 = vmatprep.subr.bf16.mxu0 0
        %657 = vmatpush1.bf16.msra.mxu0 %v560
        %658 = vmatprep.subr.bf16.mxu0 0
        %659 = vmatpush1.bf16.msra.mxu0 %v561
        %660 = vmatprep.subr.bf16.mxu0 0
        %661 = vmatpush1.bf16.msra.mxu0 %v562
        %662 = vmatprep.subr.bf16.mxu0 0
        %663 = vmatpush1.bf16.msra.mxu0 %v563
        %664 = vmatprep.subr.bf16.mxu0 0
        %665 = vmatpush1.bf16.msra.mxu0 %v564
        %666 = vmatprep.subr.bf16.mxu0 0
        %667 = vmatpush1.bf16.msra.mxu0 %v565
        %668 = vmatprep.subr.bf16.mxu0 0
        %669 = vmatpush1.bf16.msra.mxu0 %v566
        %670 = vmatprep.subr.bf16.mxu0 0
        %671 = vmatpush1.bf16.msra.mxu0 %v567
        %672 = vmatprep.mubr.bf16.mxu0 %v342
        %673 = vmatmul.mubr.bf16.gmra.mrb[0].mxu0 %v341
        %v674 = vpop.f32.mrb[0].mxu0
        %v675 = vadd.f32 %v635, %v674
        %v676 = vpop.f32.mrb[0].mxu0
        %v677 = vpop.f32.mrb[0].mxu0
        %v678 = vpop.f32.mrb[0].mxu0
        %679 = vdwg.mxu0
        %v680 = vadd.f32 %v343, %v675
        %vm681 = vcmask 408576
        %682 = vst.msk [vmem:[#allocation2] sm:$0xff] %vm681, %v680
        %p683 = scmp.eq.s32.totalorder %s29, 1
        // Predicated region
        $region37: #{tpu_custom_call.1} parent=31 // pred_check
          %p684 = pneg %p683
        $region38: #{tpu_custom_call.1} parent=31 // pred_check_branch
          %686 = sbr.rel (%p684) target = $region40
        $region39: #{tpu_custom_call.1} parent=31 // pred_region
          %v687 = vld [vmem:[#allocation2] sm:$0xff]
          %v688 = vld [vmem:[%s2] sm:$0x3]
          %vm689 = vcmask 64512
          %v691 = vsel %vm689, %v688, 0
          %693 = vmatprep.subr.mxu0 0.0
          %694 = vmatpush1.msra.mxu0 %v687
          %695 = vmatprep.subr.mxu0 0.0
          %696 = vmatpush1.msra.mxu0 0.0
          %697 = vmatprep.subr.mxu0 0.0
          %698 = vmatpush1.msra.mxu0 0.0
          %699 = vmatprep.subr.mxu0 0.0
          %700 = vmatpush1.msra.mxu0 0.0
          %701 = vmatprep.subr.mxu0 0.0
          %702 = vmatpush1.msra.mxu0 0.0
          %703 = vmatprep.subr.mxu0 0.0
          %704 = vmatpush1.msra.mxu0 0.0
          %705 = vmatprep.subr.mxu0 0.0
          %706 = vmatpush1.msra.mxu0 0.0
          %707 = vmatprep.subr.mxu0 0.0
          %708 = vmatpush1.msra.mxu0 0.0
          %709 = vmatprep.subr.mxu0 0.0
          %710 = vmatpush1.msra.mxu0 0.0
          %711 = vmatprep.subr.mxu0 0.0
          %712 = vmatpush1.msra.mxu0 0.0
          %713 = vmatprep.subr.mxu0 0.0
          %714 = vmatpush1.msra.mxu0 0.0
          %715 = vmatprep.subr.mxu0 0.0
          %716 = vmatpush1.msra.mxu0 0.0
          %717 = vmatprep.subr.mxu0 0.0
          %718 = vmatpush1.msra.mxu0 0.0
          %719 = vmatprep.subr.mxu0 0.0
          %720 = vmatpush1.msra.mxu0 0.0
          %721 = vmatprep.subr.mxu0 0.0
          %722 = vmatpush1.msra.mxu0 0.0
          %723 = vmatprep.subr.mxu0 0.0
          %724 = vmatpush1.msra.mxu0 0.0
          %725 = vmatprep.subr.mxu0 0.0
          %726 = vmatpush1.msra.mxu0 0.0
          %727 = vmatprep.subr.mxu0 0.0
          %728 = vmatpush1.msra.mxu0 0.0
          %729 = vmatprep.subr.mxu0 0.0
          %730 = vmatpush1.msra.mxu0 0.0
          %731 = vmatprep.subr.mxu0 0.0
          %732 = vmatpush1.msra.mxu0 0.0
          %733 = vmatprep.subr.mxu0 0.0
          %734 = vmatpush1.msra.mxu0 0.0
          %735 = vmatprep.subr.mxu0 0.0
          %736 = vmatpush1.msra.mxu0 0.0
          %737 = vmatprep.subr.mxu0 0.0
          %738 = vmatpush1.msra.mxu0 0.0
          %739 = vmatprep.subr.mxu0 0.0
          %740 = vmatpush1.msra.mxu0 0.0
          %741 = vmatprep.subr.mxu0 0.0
          %742 = vmatpush1.msra.mxu0 0.0
          %743 = vmatprep.subr.mxu0 0.0
          %744 = vmatpush1.msra.mxu0 0.0
          %745 = vmatprep.subr.mxu0 0.0
          %746 = vmatpush1.msra.mxu0 0.0
          %747 = vmatprep.subr.mxu0 0.0
          %748 = vmatpush1.msra.mxu0 0.0
          %749 = vmatprep.subr.mxu0 0.0
          %750 = vmatpush1.msra.mxu0 0.0
          %751 = vmatprep.subr.mxu0 0.0
          %752 = vmatpush1.msra.mxu0 0.0
          %753 = vmatprep.subr.mxu0 0.0
          %754 = vmatpush1.msra.mxu0 0.0
          %755 = vmatprep.subr.mxu0 0.0
          %756 = vmatpush1.msra.mxu0 0.0
          %757 = vmatprep.mubr.f32.mxu0 0.0
          %758 = vmatmul.mubr.f32.gmra.mrb[0].mxu0 %v691
          %v759 = vpop.f32.mrb[0].mxu0
          %v760 = vadd.f32 0.0, %v759
          %v761 = vpop.f32.mrb[0].mxu0
          %762 = vdwg.mxu0
          %vm763 = vcmask 1024
          %764 = vst.msk [vmem:[%s327] sm:$0x3] %vm763, %v760
          %v765 = vld [vmem:[%s2 + $0x2] sm:$0x3]
          %767 = vrot.lane.b32.xlu0 %v687, 127
          %v768 = vpop.permute.xlu0 %767
          %v771 = vsel %vm689, %v765, 0
          %773 = vmatprep.subr.mxu0 0.0
          %774 = vmatpush1.msra.mxu0 %v768
          %775 = vmatprep.subr.mxu0 0.0
          %776 = vmatpush1.msra.mxu0 0.0
          %777 = vmatprep.subr.mxu0 0.0
          %778 = vmatpush1.msra.mxu0 0.0
          %779 = vmatprep.subr.mxu0 0.0
          %780 = vmatpush1.msra.mxu0 0.0
          %781 = vmatprep.subr.mxu0 0.0
          %782 = vmatpush1.msra.mxu0 0.0
          %783 = vmatprep.subr.mxu0 0.0
          %784 = vmatpush1.msra.mxu0 0.0
          %785 = vmatprep.subr.mxu0 0.0
          %786 = vmatpush1.msra.mxu0 0.0
          %787 = vmatprep.subr.mxu0 0.0
          %788 = vmatpush1.msra.mxu0 0.0
          %789 = vmatprep.subr.mxu0 0.0
          %790 = vmatpush1.msra.mxu0 0.0
          %791 = vmatprep.subr.mxu0 0.0
          %792 = vmatpush1.msra.mxu0 0.0
          %793 = vmatprep.subr.mxu0 0.0
          %794 = vmatpush1.msra.mxu0 0.0
          %795 = vmatprep.subr.mxu0 0.0
          %796 = vmatpush1.msra.mxu0 0.0
          %797 = vmatprep.subr.mxu0 0.0
          %798 = vmatpush1.msra.mxu0 0.0
          %799 = vmatprep.subr.mxu0 0.0
          %800 = vmatpush1.msra.mxu0 0.0
          %801 = vmatprep.subr.mxu0 0.0
          %802 = vmatpush1.msra.mxu0 0.0
          %803 = vmatprep.subr.mxu0 0.0
          %804 = vmatpush1.msra.mxu0 0.0
          %805 = vmatprep.subr.mxu0 0.0
          %806 = vmatpush1.msra.mxu0 0.0
          %807 = vmatprep.subr.mxu0 0.0
          %808 = vmatpush1.msra.mxu0 0.0
          %809 = vmatprep.subr.mxu0 0.0
          %810 = vmatpush1.msra.mxu0 0.0
          %811 = vmatprep.subr.mxu0 0.0
          %812 = vmatpush1.msra.mxu0 0.0
          %813 = vmatprep.subr.mxu0 0.0
          %814 = vmatpush1.msra.mxu0 0.0
          %815 = vmatprep.subr.mxu0 0.0
          %816 = vmatpush1.msra.mxu0 0.0
          %817 = vmatprep.subr.mxu0 0.0
          %818 = vmatpush1.msra.mxu0 0.0
          %819 = vmatprep.subr.mxu0 0.0
          %820 = vmatpush1.msra.mxu0 0.0
          %821 = vmatprep.subr.mxu0 0.0
          %822 = vmatpush1.msra.mxu0 0.0
          %823 = vmatprep.subr.mxu0 0.0
          %824 = vmatpush1.msra.mxu0 0.0
          %825 = vmatprep.subr.mxu0 0.0
          %826 = vmatpush1.msra.mxu0 0.0
          %827 = vmatprep.subr.mxu0 0.0
          %828 = vmatpush1.msra.mxu0 0.0
          %829 = vmatprep.subr.mxu0 0.0
          %830 = vmatpush1.msra.mxu0 0.0
          %831 = vmatprep.subr.mxu0 0.0
          %832 = vmatpush1.msra.mxu0 0.0
          %833 = vmatprep.subr.mxu0 0.0
          %834 = vmatpush1.msra.mxu0 0.0
          %835 = vmatprep.subr.mxu0 0.0
          %836 = vmatpush1.msra.mxu0 0.0
          %837 = vmatprep.mubr.f32.mxu0 0.0
          %838 = vmatmul.mubr.f32.gmra.mrb[0].mxu0 %v771
          %v839 = vpop.f32.mrb[0].mxu0
          %v840 = vadd.f32 0.0, %v839
          %v841 = vpop.f32.mrb[0].mxu0
          %842 = vdwg.mxu0
          %vm843 = vcmask 25600
          %844 = vst.msk [vmem:[%s293] sm:$0x3] %vm843, %v840
          %v845 = vld [vmem:[%s2 + $0x4] sm:$0x3]
          %846 = vrot.lane.b32.xlu0 %v687, 123
          %v847 = vpop.permute.xlu0 %846
          %v850 = vsel %vm689, %v845, 0
          %852 = vmatprep.subr.mxu0 0.0
          %853 = vmatpush1.msra.mxu0 %v847
          %854 = vmatprep.subr.mxu0 0.0
          %855 = vmatpush1.msra.mxu0 0.0
          %856 = vmatprep.subr.mxu0 0.0
          %857 = vmatpush1.msra.mxu0 0.0
          %858 = vmatprep.subr.mxu0 0.0
          %859 = vmatpush1.msra.mxu0 0.0
          %860 = vmatprep.subr.mxu0 0.0
          %861 = vmatpush1.msra.mxu0 0.0
          %862 = vmatprep.subr.mxu0 0.0
          %863 = vmatpush1.msra.mxu0 0.0
          %864 = vmatprep.subr.mxu0 0.0
          %865 = vmatpush1.msra.mxu0 0.0
          %866 = vmatprep.subr.mxu0 0.0
          %867 = vmatpush1.msra.mxu0 0.0
          %868 = vmatprep.subr.mxu0 0.0
          %869 = vmatpush1.msra.mxu0 0.0
          %870 = vmatprep.subr.mxu0 0.0
          %871 = vmatpush1.msra.mxu0 0.0
          %872 = vmatprep.subr.mxu0 0.0
          %873 = vmatpush1.msra.mxu0 0.0
          %874 = vmatprep.subr.mxu0 0.0
          %875 = vmatpush1.msra.mxu0 0.0
          %876 = vmatprep.subr.mxu0 0.0
          %877 = vmatpush1.msra.mxu0 0.0
          %878 = vmatprep.subr.mxu0 0.0
          %879 = vmatpush1.msra.mxu0 0.0
          %880 = vmatprep.subr.mxu0 0.0
          %881 = vmatpush1.msra.mxu0 0.0
          %882 = vmatprep.subr.mxu0 0.0
          %883 = vmatpush1.msra.mxu0 0.0
          %884 = vmatprep.subr.mxu0 0.0
          %885 = vmatpush1.msra.mxu0 0.0
          %886 = vmatprep.subr.mxu0 0.0
          %887 = vmatpush1.msra.mxu0 0.0
          %888 = vmatprep.subr.mxu0 0.0
          %889 = vmatpush1.msra.mxu0 0.0
          %890 = vmatprep.subr.mxu0 0.0
          %891 = vmatpush1.msra.mxu0 0.0
          %892 = vmatprep.subr.mxu0 0.0
          %893 = vmatpush1.msra.mxu0 0.0
          %894 = vmatprep.subr.mxu0 0.0
          %895 = vmatpush1.msra.mxu0 0.0
          %896 = vmatprep.subr.mxu0 0.0
          %897 = vmatpush1.msra.mxu0 0.0
          %898 = vmatprep.subr.mxu0 0.0
          %899 = vmatpush1.msra.mxu0 0.0
          %900 = vmatprep.subr.mxu0 0.0
          %901 = vmatpush1.msra.mxu0 0.0
          %902 = vmatprep.subr.mxu0 0.0
          %903 = vmatpush1.msra.mxu0 0.0
          %904 = vmatprep.subr.mxu0 0.0
          %905 = vmatpush1.msra.mxu0 0.0
          %906 = vmatprep.subr.mxu0 0.0
          %907 = vmatpush1.msra.mxu0 0.0
          %908 = vmatprep.subr.mxu0 0.0
          %909 = vmatpush1.msra.mxu0 0.0
          %910 = vmatprep.subr.mxu0 0.0
          %911 = vmatpush1.msra.mxu0 0.0
          %912 = vmatprep.subr.mxu0 0.0
          %913 = vmatpush1.msra.mxu0 0.0
          %914 = vmatprep.subr.mxu0 0.0
          %915 = vmatpush1.msra.mxu0 0.0
          %916 = vmatprep.mubr.f32.mxu0 0.0
          %917 = vmatmul.mubr.f32.gmra.mrb[0].mxu0 %v850
          %v918 = vpop.f32.mrb[0].mxu0
          %v919 = vadd.f32 0.0, %v918
          %v920 = vpop.f32.mrb[0].mxu0
          %921 = vdwg.mxu0
          %vm922 = vcmask 66560
          %923 = vst.msk [vmem:[%s300] sm:$0x3] %vm922, %v919
          %v924 = vld [vmem:[%s2 + $0x6] sm:$0x3]
          %925 = vrot.lane.b32.xlu0 %v687, 114
          %v926 = vpop.permute.xlu0 %925
          %v929 = vsel %vm689, %v924, 0
          %931 = vmatprep.subr.mxu0 0.0
          %932 = vmatpush1.msra.mxu0 %v926
          %933 = vmatprep.subr.mxu0 0.0
          %934 = vmatpush1.msra.mxu0 0.0
          %935 = vmatprep.subr.mxu0 0.0
          %936 = vmatpush1.msra.mxu0 0.0
          %937 = vmatprep.subr.mxu0 0.0
          %938 = vmatpush1.msra.mxu0 0.0
          %939 = vmatprep.subr.mxu0 0.0
          %940 = vmatpush1.msra.mxu0 0.0
          %941 = vmatprep.subr.mxu0 0.0
          %942 = vmatpush1.msra.mxu0 0.0
          %943 = vmatprep.subr.mxu0 0.0
          %944 = vmatpush1.msra.mxu0 0.0
          %945 = vmatprep.subr.mxu0 0.0
          %946 = vmatpush1.msra.mxu0 0.0
          %947 = vmatprep.subr.mxu0 0.0
          %948 = vmatpush1.msra.mxu0 0.0
          %949 = vmatprep.subr.mxu0 0.0
          %950 = vmatpush1.msra.mxu0 0.0
          %951 = vmatprep.subr.mxu0 0.0
          %952 = vmatpush1.msra.mxu0 0.0
          %953 = vmatprep.subr.mxu0 0.0
          %954 = vmatpush1.msra.mxu0 0.0
          %955 = vmatprep.subr.mxu0 0.0
          %956 = vmatpush1.msra.mxu0 0.0
          %957 = vmatprep.subr.mxu0 0.0
          %958 = vmatpush1.msra.mxu0 0.0
          %959 = vmatprep.subr.mxu0 0.0
          %960 = vmatpush1.msra.mxu0 0.0
          %961 = vmatprep.subr.mxu0 0.0
          %962 = vmatpush1.msra.mxu0 0.0
          %963 = vmatprep.subr.mxu0 0.0
          %964 = vmatpush1.msra.mxu0 0.0
          %965 = vmatprep.subr.mxu0 0.0
          %966 = vmatpush1.msra.mxu0 0.0
          %967 = vmatprep.subr.mxu0 0.0
          %968 = vmatpush1.msra.mxu0 0.0
          %969 = vmatprep.subr.mxu0 0.0
          %970 = vmatpush1.msra.mxu0 0.0
          %971 = vmatprep.subr.mxu0 0.0
          %972 = vmatpush1.msra.mxu0 0.0
          %973 = vmatprep.subr.mxu0 0.0
          %974 = vmatpush1.msra.mxu0 0.0
          %975 = vmatprep.subr.mxu0 0.0
          %976 = vmatpush1.msra.mxu0 0.0
          %977 = vmatprep.subr.mxu0 0.0
          %978 = vmatpush1.msra.mxu0 0.0
          %979 = vmatprep.subr.mxu0 0.0
          %980 = vmatpush1.msra.mxu0 0.0
          %981 = vmatprep.subr.mxu0 0.0
          %982 = vmatpush1.msra.mxu0 0.0
          %983 = vmatprep.subr.mxu0 0.0
          %984 = vmatpush1.msra.mxu0 0.0
          %985 = vmatprep.subr.mxu0 0.0
          %986 = vmatpush1.msra.mxu0 0.0
          %987 = vmatprep.subr.mxu0 0.0
          %988 = vmatpush1.msra.mxu0 0.0
          %989 = vmatprep.subr.mxu0 0.0
          %990 = vmatpush1.msra.mxu0 0.0
          %991 = vmatprep.subr.mxu0 0.0
          %992 = vmatpush1.msra.mxu0 0.0
          %993 = vmatprep.subr.mxu0 0.0
          %994 = vmatpush1.msra.mxu0 0.0
          %995 = vmatprep.mubr.f32.mxu0 0.0
          %996 = vmatmul.mubr.f32.gmra.mrb[0].mxu0 %v929
          %v997 = vpop.f32.mrb[0].mxu0
          %v998 = vadd.f32 0.0, %v997
          %v999 = vpop.f32.mrb[0].mxu0
          %1000 = vdwg.mxu0
          %vm1001 = vcmask 287744
          %1002 = vst.msk [vmem:[%s307] sm:$0x3] %vm1001, %v998
        $region40: #{tpu_custom_call.1} parent=31 // pred_fallthru
          _
        %p1003 = scmp.lt.s32.totalorder %s28, 1
        %s1004 = scalar_select %p1003, %s28, 1
        %s1005 = smul.addr %s1004, 2
        %s1006 = scalar_lea.vmem %s3, %s1005
        %s1007 = sand.u32 %s145, 1
        %s1008 = scalar_lea.sflag [#allocation4], %s1007
        %s1009 = sand.u32 %s145, 1
        %s1010 = smul.addr %s1009, 2
        %s1011 = scalar_lea.vmem [#allocation3], %s1010
        %s1012 = sand.u32 %s24, 1
        %s1013 = scalar_lea.sflag [#allocation6], %s1012
        %s1014 = sand.u32 %s171, 1
        %s1015 = smul.addr %s1014, 2
        %s1016 = scalar_lea.vmem [#allocation5], %s1015
        %s1017 = sand.u32 %s24, 1
        %s1018 = scalar_lea.sflag [#allocation6], %s1017
        %s1019 = sand.u32 %s197, 1
        %s1020 = smul.addr %s1019, 2
        %s1021 = scalar_lea.vmem [#allocation7], %s1020
        // Predicated region
        $region41: #{tpu_custom_call.1} parent=31 // pred_check
          %p1022 = pneg %p129
        $region42: #{tpu_custom_call.1} parent=31 // pred_check_branch
          %1024 = sbr.rel (%p1022) target = $region44
        $region43: #{tpu_custom_call.1} parent=31 // pred_region
          _
        $region44: #{tpu_custom_call.1} parent=31 // pred_fallthru
          _
        // Predicated region
        $region45: #{tpu_custom_call.1} parent=31 // pred_check
          %p1025 = pneg %p155
        $region46: #{tpu_custom_call.1} parent=31 // pred_check_branch
          %1027 = sbr.rel (%p1025) target = $region48
        $region47: #{tpu_custom_call.1} parent=31 // pred_region
          %s1029 = ssub.s32 32, 32
          %1030 = vsyncadd %s1008, %s1029
          %s1031 = smul.addr %s28, 32
          %s1032 = scalar_lea.hbm %s4, %s1031
          %s1034 = sshll.u32 %s1011, 4
          %s1035 = int_to_ptr.vmem [resolvable:$true] %s1034
          %1037 = dma.vmem_to_hbm [thread:$0]  %s1035, 32, %s1032, %s1008
        $region48: #{tpu_custom_call.1} parent=31 // pred_fallthru
          _
        // Predicated region
        $region49: #{tpu_custom_call.1} parent=31 // pred_check
          %p1038 = pneg %p181
        $region50: #{tpu_custom_call.1} parent=31 // pred_check_branch
          %1040 = sbr.rel (%p1038) target = $region52
        $region51: #{tpu_custom_call.1} parent=31 // pred_region
          %s1042 = ssub.s32 32, 32
          %1043 = vsyncadd %s1013, %s1042
          %s1044 = smul.addr %s28, 32
          %s1045 = scalar_lea.hbm %s5, %s1044
          %s1047 = sshll.u32 %s1016, 4
          %s1048 = int_to_ptr.vmem [resolvable:$true] %s1047
          %1050 = dma.vmem_to_hbm [thread:$0]  %s1048, 32, %s1045, %s1013
        $region52: #{tpu_custom_call.1} parent=31 // pred_fallthru
          _
        // Predicated region
        $region53: #{tpu_custom_call.1} parent=31 // pred_check
          %p1051 = pneg %p207
        $region54: #{tpu_custom_call.1} parent=31 // pred_check_branch
          %1053 = sbr.rel (%p1051) target = $region56
        $region55: #{tpu_custom_call.1} parent=31 // pred_region
          %s1055 = ssub.s32 32, 32
          %1056 = vsyncadd %s1018, %s1055
          %s1057 = smul.addr %s28, 32
          %s1058 = scalar_lea.hbm %s6, %s1057
          %s1060 = sshll.u32 %s1021, 4
          %s1061 = int_to_ptr.vmem [resolvable:$true] %s1060
          %1063 = dma.vmem_to_hbm [thread:$0]  %s1061, 32, %s1058, %s1018
        $region56: #{tpu_custom_call.1} parent=31 // pred_fallthru
          _
      $region32: #{tpu_custom_call.1} parent=5 // pred_fallthru
        _
      %p1064 = scmp.le.s32.totalorder 2, %s19
      // Predicated region
      $region57: #{tpu_custom_call.1} parent=5 // pred_check
        %p1065 = pneg %p1064
      $region58: #{tpu_custom_call.1} parent=5 // pred_check_branch
        %1067 = sbr.rel (%p1065) target = $region60
      $region59: #{tpu_custom_call.1} parent=5 // pred_region
        %s1068 = ssub.s32 %s19, 2
        // Predicated region
        $region61: #{tpu_custom_call.1} parent=59 // pred_check
          %p1069 = pneg %p135
        $region62: #{tpu_custom_call.1} parent=59 // pred_check_branch
          %1071 = sbr.rel (%p1069) target = $region64
        $region63: #{tpu_custom_call.1} parent=59 // pred_region
          %p1072 = scmp.lt.s32.totalorder %s30, 1
          %s1073 = scalar_select %p1072, %s30, 1
          %s1074 = smul.addr %s1073, 2
          %s1075 = scalar_lea.vmem %s3, %s1074
        $region64: #{tpu_custom_call.1} parent=59 // pred_fallthru
          _
        // Predicated region
        $region65: #{tpu_custom_call.1} parent=59 // pred_check
          %p1076 = pneg %p161
        $region66: #{tpu_custom_call.1} parent=59 // pred_check_branch
          %1078 = sbr.rel (%p1076) target = $region68
        $region67: #{tpu_custom_call.1} parent=59 // pred_region
          %s1079 = sand.u32 %s146, 1
          %s1080 = scalar_lea.sflag [#allocation4], %s1079
          %s1081 = sand.u32 %s146, 1
          %s1082 = smul.addr %s1081, 2
          %s1083 = scalar_lea.vmem [#allocation3], %s1082
          %1084 = dma.done %s1080, 32
        $region68: #{tpu_custom_call.1} parent=59 // pred_fallthru
          _
        // Predicated region
        $region69: #{tpu_custom_call.1} parent=59 // pred_check
          %p1085 = pneg %p187
        $region70: #{tpu_custom_call.1} parent=59 // pred_check_branch
          %1087 = sbr.rel (%p1085) target = $region72
        $region71: #{tpu_custom_call.1} parent=59 // pred_region
          %s1088 = sand.u32 %s25, 1
          %s1089 = scalar_lea.sflag [#allocation6], %s1088
          %s1090 = sand.u32 %s172, 1
          %s1091 = smul.addr %s1090, 2
          %s1092 = scalar_lea.vmem [#allocation5], %s1091
          %1093 = dma.done %s1089, 32
        $region72: #{tpu_custom_call.1} parent=59 // pred_fallthru
          _
        // Predicated region
        $region73: #{tpu_custom_call.1} parent=59 // pred_check
          %p1094 = pneg %p213
        $region74: #{tpu_custom_call.1} parent=59 // pred_check_branch
          %1096 = sbr.rel (%p1094) target = $region76
        $region75: #{tpu_custom_call.1} parent=59 // pred_region
          %s1097 = sand.u32 %s25, 1
          %s1098 = scalar_lea.sflag [#allocation6], %s1097
          %s1099 = sand.u32 %s198, 1
          %s1100 = smul.addr %s1099, 2
          %s1101 = scalar_lea.vmem [#allocation7], %s1100
          %1102 = dma.done %s1098, 32
        $region76: #{tpu_custom_call.1} parent=59 // pred_fallthru
          _
      $region60: #{tpu_custom_call.1} parent=5 // pred_fallthru
        _
    $region6: #{tpu_custom_call.1} parent=1 // loop_footer
      %s23 = sadd.s32 1, %s19
    $region7: #{tpu_custom_call.1} parent=1 // loop_footer_branch
      %18 = sbr.rel target = $region3
    $region8: #{tpu_custom_call.1} parent=1 // loop_exit
      _
    %1103 = vsyncpa [#allocation4], 1
    %s1104 = scalar_lea.sflag [#allocation4], 1
    %1105 = vsyncpa %s1104, 1
    %1106 = vsyncpa [#allocation6], 1
    %s1107 = scalar_lea.sflag [#allocation6], 1
    %1108 = vsyncpa %s1107, 1

</llo_original>
